<compile_context>
chip_gen: v5e
topology: v5e:2x2
jax: 0.10.0
libtpu: 0.0.40
codegen_flags: <defaults>
</compile_context>

<pallas_src>
import functools

import jax
import jax.numpy as jnp
from jax.experimental import pallas as pl
from jax.experimental.pallas import tpu as pltpu


def _round_up(n, m):
    return ((n + m - 1) // m) * m


def _posenet_kernel(x_ref, w1_ref, b1_ref, w2_ref, b2_ref, w3_ref, b3_ref, o_ref):
    # fc1: bf16 MXU operands, f32 accumulation; bias + ReLU in f32 (v5e-safe).
    h = jnp.dot(x_ref[...], w1_ref[...], preferred_element_type=jnp.float32)
    h = jnp.maximum(h + b1_ref[...], 0.0)
    # fc2
    h = jnp.dot(h.astype(jnp.bfloat16), w2_ref[...],
                preferred_element_type=jnp.float32)
    h = jnp.maximum(h + b2_ref[...], 0.0)
    # fc3
    y = jnp.dot(h.astype(jnp.bfloat16), w3_ref[...],
                preferred_element_type=jnp.float32)
    y = y + b3_ref[...]
    # PyTorch module computes 1/(1+exp(y)) == sigmoid(-y).
    # exp and the approximate reciprocal both run on the EUP slot.
    o_ref[...] = pl.reciprocal(1.0 + jnp.exp(y), approx=True).astype(o_ref.dtype)


def posenet_forward(x, params, *, tile_m=512):
    """x: (B, indim) float32. params: dict of transposed f32 weights & biases."""
    w1, b1, w2, b2, w3, b3 = (
        params["w1"], params["b1"], params["w2"],
        params["b2"], params["w3"], params["b3"],
    )
    B, indim = x.shape
    hidden = w1.shape[1]
    outdim = w3.shape[1]

    # Pad feature dims to lane-dense multiples of 128.
    Ip = _round_up(indim, 128)
    Hp = _round_up(hidden, 128)
    Op = _round_up(outdim, 128)

    # Pick batch tile: as large as requested, but keep >=2 parallel grid steps
    # when the batch allows it so v7x's second TensorCore gets work.
    tile_m = max(8, min(tile_m, _round_up(B, 8)))
    if B > 8 and pl.cdiv(B, tile_m) < 2:
        tile_m = _round_up(pl.cdiv(B, 2), 8)
    Bp = _round_up(B, tile_m)
    grid = (Bp // tile_m,)

    # Zero-pad once in the wrapper; cast matmul operands to bf16 (f32 acc in
    # kernel); biases stay f32 for the f32 elementwise epilogue.
    bf16 = jnp.bfloat16
    f32 = jnp.float32
    xp = jnp.zeros((Bp, Ip), bf16).at[:B, :indim].set(x.astype(bf16))
    w1p = jnp.zeros((Ip, Hp), bf16).at[:indim, :hidden].set(w1.astype(bf16))
    w2p = jnp.zeros((Hp, Hp), bf16).at[:hidden, :hidden].set(w2.astype(bf16))
    w3p = jnp.zeros((Hp, Op), bf16).at[:hidden, :outdim].set(w3.astype(bf16))
    b1p = jnp.zeros((1, Hp), f32).at[:, :hidden].set(b1.astype(f32))
    b2p = jnp.zeros((1, Hp), f32).at[:, :hidden].set(b2.astype(f32))
    b3p = jnp.zeros((1, Op), f32).at[:, :outdim].set(b3.astype(f32))

    in_specs = [
        pl.BlockSpec((tile_m, Ip), lambda i: (i, 0)),   # x  (tiled over batch)
        pl.BlockSpec((Ip, Hp), lambda i: (0, 0)),       # w1 (resident across grid)
        pl.BlockSpec((1, Hp), lambda i: (0, 0)),        # b1
        pl.BlockSpec((Hp, Hp), lambda i: (0, 0)),       # w2
        pl.BlockSpec((1, Hp), lambda i: (0, 0)),        # b2
        pl.BlockSpec((Hp, Op), lambda i: (0, 0)),       # w3
        pl.BlockSpec((1, Op), lambda i: (0, 0)),        # b3
    ]
    out_specs = pl.BlockSpec((tile_m, Op), lambda i: (i, 0))

    out_padded = pl.pallas_call(
        _posenet_kernel,
        out_shape=jax.ShapeDtypeStruct((Bp, Op), jnp.float32),
        grid_spec=pltpu.PrefetchScalarGridSpec(
            num_scalar_prefetch=0,
            grid=grid,
            in_specs=in_specs,
            out_specs=out_specs,
        ),
        compiler_params=pltpu.CompilerParams(
            dimension_semantics=("parallel",)),
    )(xp, w1p, b1p, w2p, b2p, w3p, b3p)

    # Drop batch/feature padding.
    return out_padded[:B, :outdim]


def init_posenet_params(key, indim, outdim, dtype=jnp.float32):
    """Deterministic init mimicking nn.Linear default (uniform +/- 1/sqrt(fan_in)).
    Weights are stored transposed: (in_features, out_features)."""
    hidden = 2 * indim
    keys = jax.random.split(key, 6)

    def linear(kw, kb, fan_in, fan_out):
        bound = 1.0 / jnp.sqrt(fan_in)
        w = jax.random.uniform(kw, (fan_in, fan_out), dtype, -bound, bound)
        b = jax.random.uniform(kb, (1, fan_out), dtype, -bound, bound)
        return w, b

    w1, b1 = linear(keys[0], keys[1], indim, hidden)
    w2, b2 = linear(keys[2], keys[3], hidden, hidden)
    w3, b3 = linear(keys[4], keys[5], hidden, outdim)
    return {"w1": w1, "b1": b1, "w2": w2, "b2": b2, "w3": w3, "b3": b3}


def posenet_ref(x, params):
    """Pure-JAX f32 reference (exact module semantics) for correctness checking."""
    h = jnp.maximum(x @ params["w1"] + params["b1"], 0.0)
    h = jnp.maximum(h @ params["w2"] + params["b2"], 0.0)
    y = h @ params["w3"] + params["b3"]
    return 1.0 / (1.0 + jnp.exp(y))


if __name__ == "__main__":
    key = jax.random.PRNGKey(0)
    k_params, k_x = jax.random.split(key)

    batch, indim, outdim = 16, 32, 16
    params = init_posenet_params(k_params, indim, outdim)
    x = jax.random.normal(k_x, (batch, indim), dtype=jnp.float32)

    fwd = jax.jit(functools.partial(posenet_forward, tile_m=512))
    out = jax.block_until_ready(fwd(x, params))

    ref = posenet_ref(x, params)
    assert out.shape == (batch, outdim)
    # bf16 matmul inputs + approximate reciprocal => modest tolerance vs f32 ref.
    assert jnp.allclose(out, ref, atol=1e-2, rtol=1e-2), "mismatch vs reference"

    print("KERNEL_OK")
</pallas_src>

<mosaic_0001>
module attributes {stable_mosaic.version = 11 : i64} {
  func.func @_posenet_kernel(%arg0: i32, %arg1: memref<8x128xbf16, #tpu.memory_space<vmem>>, %arg2: memref<128x128xbf16, #tpu.memory_space<vmem>>, %arg3: memref<1x128xf32, #tpu.memory_space<vmem>>, %arg4: memref<128x128xbf16, #tpu.memory_space<vmem>>, %arg5: memref<1x128xf32, #tpu.memory_space<vmem>>, %arg6: memref<128x128xbf16, #tpu.memory_space<vmem>>, %arg7: memref<1x128xf32, #tpu.memory_space<vmem>>, %arg8: memref<8x128xf32, #tpu.memory_space<vmem>>) attributes {dimension_semantics = [#tpu.dimension_semantics<parallel>], iteration_bounds = array<i64: 2>, scalar_prefetch = 0 : i64, scratch_operands = 0 : i64, tpu.core_type = #tpu.core_type<tc>, window_params = [{transform_indices = @transform_0, window_bounds = array<i64: 8, 128>}, {pipeline_mode = #tpu.pipeline_mode<synchronous>, transform_indices = @transform_1, window_bounds = array<i64: 128, 128>}, {pipeline_mode = #tpu.pipeline_mode<synchronous>, transform_indices = @transform_2, window_bounds = array<i64: 1, 128>}, {pipeline_mode = #tpu.pipeline_mode<synchronous>, transform_indices = @transform_3, window_bounds = array<i64: 128, 128>}, {pipeline_mode = #tpu.pipeline_mode<synchronous>, transform_indices = @transform_4, window_bounds = array<i64: 1, 128>}, {pipeline_mode = #tpu.pipeline_mode<synchronous>, transform_indices = @transform_5, window_bounds = array<i64: 128, 128>}, {pipeline_mode = #tpu.pipeline_mode<synchronous>, transform_indices = @transform_6, window_bounds = array<i64: 1, 128>}, {transform_indices = @transform_7, window_bounds = array<i64: 8, 128>}]} {
    %c0 = arith.constant 0 : index
    %c0_0 = arith.constant 0 : index
    %0 = vector.load %arg1[%c0, %c0_0] : memref<8x128xbf16, #tpu.memory_space<vmem>>, vector<8x128xbf16>
    %c0_1 = arith.constant 0 : index
    %c0_2 = arith.constant 0 : index
    %1 = vector.load %arg2[%c0_1, %c0_2] : memref<128x128xbf16, #tpu.memory_space<vmem>>, vector<128x128xbf16>
    %cst = arith.constant dense<0.000000e+00> : vector<8x128xf32>
    %2 = tpu.matmul %0, %1, %cst {dimension_numbers = #tpu.dot_dimension_numbers<[1], [0], [0], [1], [0, 0, 1, 1], [], []>} : vector<8x128xbf16>, vector<128x128xbf16>, vector<8x128xf32> -> vector<8x128xf32>
    %c0_3 = arith.constant 0 : index
    %c0_4 = arith.constant 0 : index
    %3 = vector.load %arg3[%c0_3, %c0_4] : memref<1x128xf32, #tpu.memory_space<vmem>>, vector<1x128xf32>
    %4 = vector.broadcast %3 : vector<1x128xf32> to vector<8x128xf32>
    %5 = arith.addf %2, %4 : vector<8x128xf32>
    %cst_5 = arith.constant 0.000000e+00 : f32
    %6 = vector.broadcast %cst_5 : f32 to vector<8x128xf32>
    %7 = arith.maximumf %5, %6 : vector<8x128xf32>
    %8 = arith.truncf %7 : vector<8x128xf32> to vector<8x128xbf16>
    %c0_6 = arith.constant 0 : index
    %c0_7 = arith.constant 0 : index
    %9 = vector.load %arg4[%c0_6, %c0_7] : memref<128x128xbf16, #tpu.memory_space<vmem>>, vector<128x128xbf16>
    %cst_8 = arith.constant dense<0.000000e+00> : vector<8x128xf32>
    %10 = tpu.matmul %8, %9, %cst_8 {dimension_numbers = #tpu.dot_dimension_numbers<[1], [0], [0], [1], [0, 0, 1, 1], [], []>} : vector<8x128xbf16>, vector<128x128xbf16>, vector<8x128xf32> -> vector<8x128xf32>
    %c0_9 = arith.constant 0 : index
    %c0_10 = arith.constant 0 : index
    %11 = vector.load %arg5[%c0_9, %c0_10] : memref<1x128xf32, #tpu.memory_space<vmem>>, vector<1x128xf32>
    %12 = vector.broadcast %11 : vector<1x128xf32> to vector<8x128xf32>
    %13 = arith.addf %10, %12 : vector<8x128xf32>
    %cst_11 = arith.constant 0.000000e+00 : f32
    %14 = vector.broadcast %cst_11 : f32 to vector<8x128xf32>
    %15 = arith.maximumf %13, %14 : vector<8x128xf32>
    %16 = arith.truncf %15 : vector<8x128xf32> to vector<8x128xbf16>
    %c0_12 = arith.constant 0 : index
    %c0_13 = arith.constant 0 : index
    %17 = vector.load %arg6[%c0_12, %c0_13] : memref<128x128xbf16, #tpu.memory_space<vmem>>, vector<128x128xbf16>
    %cst_14 = arith.constant dense<0.000000e+00> : vector<8x128xf32>
    %18 = tpu.matmul %16, %17, %cst_14 {dimension_numbers = #tpu.dot_dimension_numbers<[1], [0], [0], [1], [0, 0, 1, 1], [], []>} : vector<8x128xbf16>, vector<128x128xbf16>, vector<8x128xf32> -> vector<8x128xf32>
    %c0_15 = arith.constant 0 : index
    %c0_16 = arith.constant 0 : index
    %19 = vector.load %arg7[%c0_15, %c0_16] : memref<1x128xf32, #tpu.memory_space<vmem>>, vector<1x128xf32>
    %20 = vector.broadcast %19 : vector<1x128xf32> to vector<8x128xf32>
    %21 = arith.addf %18, %20 : vector<8x128xf32>
    %22 = math.exp %21 : vector<8x128xf32>
    %cst_17 = arith.constant 1.000000e+00 : f32
    %23 = vector.broadcast %cst_17 : f32 to vector<8x128xf32>
    %24 = arith.addf %23, %22 : vector<8x128xf32>
    %25 = tpu.reciprocal %24 {approx = true} : vector<8x128xf32> -> vector<8x128xf32>
    %c0_18 = arith.constant 0 : index
    %c0_19 = arith.constant 0 : index
    %26 = vector.load %arg8[%c0_18, %c0_19] : memref<8x128xf32, #tpu.memory_space<vmem>>, vector<8x128xf32>
    tpu.vector_store %arg8[%c0_18, %c0_19], %25 {strides = array<i32>} : memref<8x128xf32, #tpu.memory_space<vmem>>, vector<8x128xf32>,
    return
  }
  func.func @transform_0(%arg0: i32) -> (i32, i32) {
    %c0_i32 = arith.constant 0 : i32
    %c0_i32_0 = arith.constant 0 : i32
    return %arg0, %c0_i32 : i32, i32
  }
  func.func @transform_1(%arg0: i32) -> (i32, i32) {
    %c0_i32 = arith.constant 0 : i32
    %c0_i32_0 = arith.constant 0 : i32
    %c0_i32_1 = arith.constant 0 : i32
    return %c0_i32, %c0_i32_0 : i32, i32
  }
  func.func @transform_2(%arg0: i32) -> (i32, i32) {
    %c0_i32 = arith.constant 0 : i32
    %c0_i32_0 = arith.constant 0 : i32
    %c0_i32_1 = arith.constant 0 : i32
    return %c0_i32, %c0_i32_0 : i32, i32
  }
  func.func @transform_3(%arg0: i32) -> (i32, i32) {
    %c0_i32 = arith.constant 0 : i32
    %c0_i32_0 = arith.constant 0 : i32
    %c0_i32_1 = arith.constant 0 : i32
    return %c0_i32, %c0_i32_0 : i32, i32
  }
  func.func @transform_4(%arg0: i32) -> (i32, i32) {
    %c0_i32 = arith.constant 0 : i32
    %c0_i32_0 = arith.constant 0 : i32
    %c0_i32_1 = arith.constant 0 : i32
    return %c0_i32, %c0_i32_0 : i32, i32
  }
  func.func @transform_5(%arg0: i32) -> (i32, i32) {
    %c0_i32 = arith.constant 0 : i32
    %c0_i32_0 = arith.constant 0 : i32
    %c0_i32_1 = arith.constant 0 : i32
    return %c0_i32, %c0_i32_0 : i32, i32
  }
  func.func @transform_6(%arg0: i32) -> (i32, i32) {
    %c0_i32 = arith.constant 0 : i32
    %c0_i32_0 = arith.constant 0 : i32
    %c0_i32_1 = arith.constant 0 : i32
    return %c0_i32, %c0_i32_0 : i32, i32
  }
  func.func @transform_7(%arg0: i32) -> (i32, i32) {
    %c0_i32 = arith.constant 0 : i32
    %c0_i32_0 = arith.constant 0 : i32
    return %arg0, %c0_i32 : i32, i32
  }
}

</mosaic_0001>

<llo_original>
// kernel: posenet_forward.1
$region0: #{posenet_forward.1}
  #allocation0 [shape = 'u32[]', space=smem, size = 0x4, offset = 0x4, fixed_abs, tag = 'smem constant byte address 0x4 - core index']
  #allocation1 [shape = 'u32[72,128]{1,0:T(1,128)}', space=vmem, size = 0x9000, scoped, tag = 'internal scratch']
  %s0 = inlined_call_operand.vmem [shape: bf16[16,128], index: 0, kind: input, shape index: {}]
  %s1 = inlined_call_operand.vmem [shape: bf16[128,128], index: 1, kind: input, shape index: {}]
  %s2 = inlined_call_operand.vmem [shape: f32[1,128], index: 2, kind: input, shape index: {}]
  %s3 = inlined_call_operand.vmem [shape: bf16[128,128], index: 3, kind: input, shape index: {}]
  %s4 = inlined_call_operand.vmem [shape: f32[1,128], index: 4, kind: input, shape index: {}]
  %s5 = inlined_call_operand.vmem [shape: bf16[128,128], index: 5, kind: input, shape index: {}]
  %s6 = inlined_call_operand.vmem [shape: f32[1,128], index: 6, kind: input, shape index: {}]
  %s7 = inlined_call_operand.hbm [shape: f32[16,128], index: 7, kind: output, shape index: {}]
  %s8 = sld [smem:[#allocation0]]
  $region61: #{posenet_forward.1} parent=0
    _
  %s10 = ssub.s32 1, %s8
  %s11 = scalar_select 0, %s10, %s8
  $region1: #{posenet_forward.1} parent=0
    #allocation2 [shape = 'u8[8192]{0}', space=vmem, size = 0x2000, scoped, tag = 'output window, operand 0']
    #allocation3 [shape = 's32[2]{0}', space=sflag, size = 0x8, scoped, tag = 'scoped memory for posenet_forward.1']
    %12 = vsyncpa [#allocation3], 0
    %s13 = scalar_lea.sflag [#allocation3], 1
    %14 = vsyncpa %s13, 0
    loop: start=0, step=1, limit=4
    $region2: #{posenet_forward.1} parent=1 // loop_pre_header
      _
    $region3: #{posenet_forward.1} parent=1 // loop_header
      %s16 = sphi 0, %s20
      %p17 = scmp.ge.s32.totalorder %s16, 4
      %s26 = sphi 0, %s28
      %s29 = sphi 0, %s26
      %s30 = sphi 0, %s29
      %s46 = sphi 0, %s30
      %s50 = sphi 0, %s50
      %s52 = sphi 0, %s50
      %s53 = sphi 0, %s52
      %s67 = sphi 0, %s53
      %s71 = sphi 0, %s71
      %s73 = sphi 0, %s71
      %s74 = sphi 0, %s73
      %s88 = sphi 0, %s74
      %s92 = sphi 0, %s92
      %s94 = sphi 0, %s92
      %s95 = sphi 0, %s94
      %s109 = sphi 0, %s95
      %s113 = sphi 0, %s113
      %s115 = sphi 0, %s113
      %s116 = sphi 0, %s115
      %s130 = sphi 0, %s116
      %s134 = sphi 0, %s134
      %s136 = sphi 0, %s134
      %s137 = sphi 0, %s136
      %s151 = sphi 0, %s137
      %s155 = sphi 0, %s155
      %s157 = sphi 0, %s155
      %s158 = sphi 0, %s157
      %s172 = sphi 0, %s158
      %s178 = sphi 0, %s180
      %s181 = sphi 0, %s178
      %s182 = sphi 0, %s181
      %s198 = sphi 0, %s182
    $region4: #{posenet_forward.1} parent=1 // loop_header_branch
      %19 = sbr.rel (%p17) target = $region8
    $region5: #{posenet_forward.1} parent=1 // loop_body
      %s21 = ssub.s32 %s16, 1
      %s22 = ssub.s32 %s16, 2
      %s23 = sadd.s32 %s16, 1
      %s24 = ssub.s32 %s16, %s23
      %p25 = scmp.eq.s32.totalorder %s24, 0
      %s27 = sadd.s32 %s26, 1
      %s28 = scalar_select %p25, %s26, %s27
      %p31 = pneg %p25
      %p32 = scmp.eq.s32.totalorder %s16, 1
      %p33 = por %p31, %p32
      %p34 = scmp.ne.s32.totalorder %s26, %s29
      %p35 = scmp.eq.s32.totalorder %s16, 0
      %p36 = por %p34, %p35
      %p37 = scmp.ne.s32.totalorder %s26, %s29
      %p38 = scmp.eq.s32.totalorder %s21, 1
      %p39 = por %p37, %p38
      %p40 = scmp.ne.s32.totalorder %s29, %s30
      %p41 = scmp.eq.s32.totalorder %s21, 0
      %p42 = por %p40, %p41
      %p43 = scmp.ne.s32.totalorder %s29, %s30
      %p44 = scmp.eq.s32.totalorder %s22, 1
      %p45 = por %p43, %p44
      %p47 = scmp.ne.s32.totalorder %s30, %s46
      %p48 = scmp.eq.s32.totalorder %s22, 0
      %p49 = por %p47, %p48
      %s51 = sadd.s32 %s50, 1
      %p54 = scmp.eq.s32.totalorder %s16, 1
      %p55 = scmp.ne.s32.totalorder %s50, %s52
      %p56 = scmp.eq.s32.totalorder %s16, 0
      %p57 = por %p55, %p56
      %p58 = scmp.ne.s32.totalorder %s50, %s52
      %p59 = scmp.eq.s32.totalorder %s21, 1
      %p60 = por %p58, %p59
      %p61 = scmp.ne.s32.totalorder %s52, %s53
      %p62 = scmp.eq.s32.totalorder %s21, 0
      %p63 = por %p61, %p62
      %p64 = scmp.ne.s32.totalorder %s52, %s53
      %p65 = scmp.eq.s32.totalorder %s22, 1
      %p66 = por %p64, %p65
      %p68 = scmp.ne.s32.totalorder %s53, %s67
      %p69 = scmp.eq.s32.totalorder %s22, 0
      %p70 = por %p68, %p69
      %s72 = sadd.s32 %s71, 1
      %p75 = scmp.eq.s32.totalorder %s16, 1
      %p76 = scmp.ne.s32.totalorder %s71, %s73
      %p77 = scmp.eq.s32.totalorder %s16, 0
      %p78 = por %p76, %p77
      %p79 = scmp.ne.s32.totalorder %s71, %s73
      %p80 = scmp.eq.s32.totalorder %s21, 1
      %p81 = por %p79, %p80
      %p82 = scmp.ne.s32.totalorder %s73, %s74
      %p83 = scmp.eq.s32.totalorder %s21, 0
      %p84 = por %p82, %p83
      %p85 = scmp.ne.s32.totalorder %s73, %s74
      %p86 = scmp.eq.s32.totalorder %s22, 1
      %p87 = por %p85, %p86
      %p89 = scmp.ne.s32.totalorder %s74, %s88
      %p90 = scmp.eq.s32.totalorder %s22, 0
      %p91 = por %p89, %p90
      %s93 = sadd.s32 %s92, 1
      %p96 = scmp.eq.s32.totalorder %s16, 1
      %p97 = scmp.ne.s32.totalorder %s92, %s94
      %p98 = scmp.eq.s32.totalorder %s16, 0
      %p99 = por %p97, %p98
      %p100 = scmp.ne.s32.totalorder %s92, %s94
      %p101 = scmp.eq.s32.totalorder %s21, 1
      %p102 = por %p100, %p101
      %p103 = scmp.ne.s32.totalorder %s94, %s95
      %p104 = scmp.eq.s32.totalorder %s21, 0
      %p105 = por %p103, %p104
      %p106 = scmp.ne.s32.totalorder %s94, %s95
      %p107 = scmp.eq.s32.totalorder %s22, 1
      %p108 = por %p106, %p107
      %p110 = scmp.ne.s32.totalorder %s95, %s109
      %p111 = scmp.eq.s32.totalorder %s22, 0
      %p112 = por %p110, %p111
      %s114 = sadd.s32 %s113, 1
      %p117 = scmp.eq.s32.totalorder %s16, 1
      %p118 = scmp.ne.s32.totalorder %s113, %s115
      %p119 = scmp.eq.s32.totalorder %s16, 0
      %p120 = por %p118, %p119
      %p121 = scmp.ne.s32.totalorder %s113, %s115
      %p122 = scmp.eq.s32.totalorder %s21, 1
      %p123 = por %p121, %p122
      %p124 = scmp.ne.s32.totalorder %s115, %s116
      %p125 = scmp.eq.s32.totalorder %s21, 0
      %p126 = por %p124, %p125
      %p127 = scmp.ne.s32.totalorder %s115, %s116
      %p128 = scmp.eq.s32.totalorder %s22, 1
      %p129 = por %p127, %p128
      %p131 = scmp.ne.s32.totalorder %s116, %s130
      %p132 = scmp.eq.s32.totalorder %s22, 0
      %p133 = por %p131, %p132
      %s135 = sadd.s32 %s134, 1
      %p138 = scmp.eq.s32.totalorder %s16, 1
      %p139 = scmp.ne.s32.totalorder %s134, %s136
      %p140 = scmp.eq.s32.totalorder %s16, 0
      %p141 = por %p139, %p140
      %p142 = scmp.ne.s32.totalorder %s134, %s136
      %p143 = scmp.eq.s32.totalorder %s21, 1
      %p144 = por %p142, %p143
      %p145 = scmp.ne.s32.totalorder %s136, %s137
      %p146 = scmp.eq.s32.totalorder %s21, 0
      %p147 = por %p145, %p146
      %p148 = scmp.ne.s32.totalorder %s136, %s137
      %p149 = scmp.eq.s32.totalorder %s22, 1
      %p150 = por %p148, %p149
      %p152 = scmp.ne.s32.totalorder %s137, %s151
      %p153 = scmp.eq.s32.totalorder %s22, 0
      %p154 = por %p152, %p153
      %s156 = sadd.s32 %s155, 1
      %p159 = scmp.eq.s32.totalorder %s16, 1
      %p160 = scmp.ne.s32.totalorder %s155, %s157
      %p161 = scmp.eq.s32.totalorder %s16, 0
      %p162 = por %p160, %p161
      %p163 = scmp.ne.s32.totalorder %s155, %s157
      %p164 = scmp.eq.s32.totalorder %s21, 1
      %p165 = por %p163, %p164
      %p166 = scmp.ne.s32.totalorder %s157, %s158
      %p167 = scmp.eq.s32.totalorder %s21, 0
      %p168 = por %p166, %p167
      %p169 = scmp.ne.s32.totalorder %s157, %s158
      %p170 = scmp.eq.s32.totalorder %s22, 1
      %p171 = por %p169, %p170
      %p173 = scmp.ne.s32.totalorder %s158, %s172
      %p174 = scmp.eq.s32.totalorder %s22, 0
      %p175 = por %p173, %p174
      %s176 = ssub.s32 %s16, %s23
      %p177 = scmp.eq.s32.totalorder %s176, 0
      %s179 = sadd.s32 %s178, 1
      %s180 = scalar_select %p177, %s178, %s179
      %p183 = pneg %p177
      %p184 = scmp.eq.s32.totalorder %s16, 1
      %p185 = por %p183, %p184
      %p186 = scmp.ne.s32.totalorder %s178, %s181
      %p187 = scmp.eq.s32.totalorder %s16, 0
      %p188 = por %p186, %p187
      %p189 = scmp.ne.s32.totalorder %s178, %s181
      %p190 = scmp.eq.s32.totalorder %s21, 1
      %p191 = por %p189, %p190
      %p192 = scmp.ne.s32.totalorder %s181, %s182
      %p193 = scmp.eq.s32.totalorder %s21, 0
      %p194 = por %p192, %p193
      %p195 = scmp.ne.s32.totalorder %s181, %s182
      %p196 = scmp.eq.s32.totalorder %s22, 1
      %p197 = por %p195, %p196
      %p199 = scmp.ne.s32.totalorder %s182, %s198
      %p200 = scmp.eq.s32.totalorder %s22, 0
      %p201 = por %p199, %p200
      %p202 = scmp.le.s32.totalorder 1, %s16
      %p203 = scmp.lt.s32.totalorder %s16, 3
      %p204 = pnand %p202, %p203
      %p205 = pneg %p204
      // Predicated region
      $region9: #{posenet_forward.1} parent=5 // pred_check
        _
      $region10: #{posenet_forward.1} parent=5 // pred_check_branch
        %207 = sbr.rel (%p204) target = $region12
      $region11: #{posenet_forward.1} parent=5 // pred_region
        %s208 = ssub.s32 %s16, 1
        // Predicated region
        $region13: #{posenet_forward.1} parent=11 // pred_check
          %p209 = pneg %p63
        $region14: #{posenet_forward.1} parent=11 // pred_check_branch
          %211 = sbr.rel (%p209) target = $region16
        $region15: #{posenet_forward.1} parent=11 // pred_region
          _
        $region16: #{posenet_forward.1} parent=11 // pred_fallthru
          _
        // Predicated region
        $region17: #{posenet_forward.1} parent=11 // pred_check
          %p212 = pneg %p84
        $region18: #{posenet_forward.1} parent=11 // pred_check_branch
          %214 = sbr.rel (%p212) target = $region20
        $region19: #{posenet_forward.1} parent=11 // pred_region
          _
        $region20: #{posenet_forward.1} parent=11 // pred_fallthru
          _
        // Predicated region
        $region21: #{posenet_forward.1} parent=11 // pred_check
          %p215 = pneg %p105
        $region22: #{posenet_forward.1} parent=11 // pred_check_branch
          %217 = sbr.rel (%p215) target = $region24
        $region23: #{posenet_forward.1} parent=11 // pred_region
          _
        $region24: #{posenet_forward.1} parent=11 // pred_fallthru
          _
        // Predicated region
        $region25: #{posenet_forward.1} parent=11 // pred_check
          %p218 = pneg %p126
        $region26: #{posenet_forward.1} parent=11 // pred_check_branch
          %220 = sbr.rel (%p218) target = $region28
        $region27: #{posenet_forward.1} parent=11 // pred_region
          _
        $region28: #{posenet_forward.1} parent=11 // pred_fallthru
          _
        // Predicated region
        $region29: #{posenet_forward.1} parent=11 // pred_check
          %p221 = pneg %p147
        $region30: #{posenet_forward.1} parent=11 // pred_check_branch
          %223 = sbr.rel (%p221) target = $region32
        $region31: #{posenet_forward.1} parent=11 // pred_region
          _
        $region32: #{posenet_forward.1} parent=11 // pred_fallthru
          _
        // Predicated region
        $region33: #{posenet_forward.1} parent=11 // pred_check
          %p224 = pneg %p168
        $region34: #{posenet_forward.1} parent=11 // pred_check_branch
          %226 = sbr.rel (%p224) target = $region36
        $region35: #{posenet_forward.1} parent=11 // pred_region
          _
        $region36: #{posenet_forward.1} parent=11 // pred_fallthru
          _
      $region12: #{posenet_forward.1} parent=5 // pred_fallthru
        _
      %p227 = scmp.lt.s32.totalorder %s16, 2
      // Predicated region
      $region37: #{posenet_forward.1} parent=5 // pred_check
        %p228 = pneg %p227
      $region38: #{posenet_forward.1} parent=5 // pred_check_branch
        %230 = sbr.rel (%p228) target = $region40
      $region39: #{posenet_forward.1} parent=5 // pred_region
        // Predicated region
        $region41: #{posenet_forward.1} parent=39 // pred_check
          %p231 = pneg %p36
        $region42: #{posenet_forward.1} parent=39 // pred_check_branch
          %233 = sbr.rel (%p231) target = $region44
        $region43: #{posenet_forward.1} parent=39 // pred_region
          %p234 = scmp.lt.s32.totalorder %s16, 1
          %s235 = scalar_select %p234, %s16, 1
          %s236 = smul.addr %s235, 4
          %s237 = scalar_lea.vmem %s0, %s236
        $region44: #{posenet_forward.1} parent=39 // pred_fallthru
          _
      $region40: #{posenet_forward.1} parent=5 // pred_fallthru
        _
      %p238 = scmp.le.s32.totalorder 1, %s16
      %p239 = scmp.lt.s32.totalorder %s16, 3
      %p240 = pnand %p238, %p239
      %p241 = pneg %p240
      // Predicated region
      $region45: #{posenet_forward.1} parent=5 // pred_check
        _
      $region46: #{posenet_forward.1} parent=5 // pred_check_branch
        %243 = sbr.rel (%p240) target = $region48
      $region47: #{posenet_forward.1} parent=5 // pred_region
        %s244 = ssub.s32 %s16, 1
        %p245 = scmp.lt.s32.totalorder %s21, 1
        %s246 = scalar_select %p245, %s21, 1
        %s247 = smul.addr %s246, 4
        %s248 = scalar_lea.vmem %s0, %s247
        %p249 = pneg %p42
        %p250 = pneg %p39
        %p251 = pneg %p63
        %p252 = pneg %p60
        %p253 = pneg %p84
        %p254 = pneg %p81
        %p255 = pneg %p105
        %p256 = pneg %p102
        %p257 = pneg %p126
        %p258 = pneg %p123
        %p259 = pneg %p147
        %p260 = pneg %p144
        %p261 = pneg %p168
        %p262 = pneg %p165
        %p263 = pneg %p194
        %p264 = pneg %p191
        %s265 = sand.u32 %s181, 1
        %s266 = scalar_lea.sflag [#allocation3], %s265
        %s267 = sand.u32 %s181, 1
        %s268 = smul.addr %s267, 8
        %s269 = scalar_lea.vmem [#allocation2], %s268
        %p270 = scmp.lt.s32.totalorder %s21, 1
        %s271 = scalar_select %p270, %s21, 1
        %s272 = smul.addr %s271, 4
        %s273 = scalar_lea.vmem %s0, %s272
        %v274 = vld [vmem:[%s273] sm:$0xf]
        %v275 = vld [vmem:[%s1] sm:$0xf]
        %v276 = vld [vmem:[%s1 + $0x4] sm:$0xf]
        %v277 = vld [vmem:[%s1 + $0x8] sm:$0xf]
        %v278 = vld [vmem:[%s1 + $0xc] sm:$0xf]
        %v279 = vld [vmem:[%s1 + $0x10] sm:$0xf]
        %v280 = vld [vmem:[%s1 + $0x14] sm:$0xf]
        %v281 = vld [vmem:[%s1 + $0x18] sm:$0xf]
        %v282 = vld [vmem:[%s1 + $0x1c] sm:$0xf]
        %v283 = vld [vmem:[%s1 + $0x20] sm:$0xf]
        %v284 = vld [vmem:[%s1 + $0x24] sm:$0xf]
        %v285 = vld [vmem:[%s1 + $0x28] sm:$0xf]
        %v286 = vld [vmem:[%s1 + $0x2c] sm:$0xf]
        %v287 = vld [vmem:[%s1 + $0x30] sm:$0xf]
        %v288 = vld [vmem:[%s1 + $0x34] sm:$0xf]
        %v289 = vld [vmem:[%s1 + $0x38] sm:$0xf]
        %v290 = vld [vmem:[%s1 + $0x3c] sm:$0xf]
        %v291 = vld [vmem:[%s2] sm:$0x1]
        %v293 = vperm.slane %v291, 0
        %v311 = vunpack.c.l.b16 %v275
        %v312 = vunpack.c.l.b16 %v276
        %v313 = vunpack.c.l.b16 %v277
        %v314 = vunpack.c.l.b16 %v278
        %v315 = vunpack.c.l.b16 %v279
        %v316 = vunpack.c.l.b16 %v280
        %v317 = vunpack.c.l.b16 %v281
        %v318 = vunpack.c.l.b16 %v282
        %v319 = vunpack.c.l.b16 %v283
        %v320 = vunpack.c.l.b16 %v284
        %v321 = vunpack.c.l.b16 %v285
        %v322 = vunpack.c.l.b16 %v286
        %v323 = vunpack.c.l.b16 %v287
        %v324 = vunpack.c.l.b16 %v288
        %v325 = vunpack.c.l.b16 %v289
        %v326 = vunpack.c.l.b16 %v290
        %v327 = vpack.c.b16 %v312, %v311
        %v328 = vpack.c.b16 %v314, %v313
        %v329 = vpack.c.b16 %v316, %v315
        %v330 = vpack.c.b16 %v318, %v317
        %v331 = vpack.c.b16 %v320, %v319
        %v332 = vpack.c.b16 %v322, %v321
        %v333 = vpack.c.b16 %v324, %v323
        %v334 = vpack.c.b16 %v326, %v325
        %343 = vmatpush.bf16.msra.mxu0 %v334
        %344 = vmatpush.bf16.msra.mxu0 %v333
        %345 = vmatpush.bf16.msra.mxu0 %v332
        %346 = vmatpush.bf16.msra.mxu0 %v331
        %347 = vmatpush.bf16.msra.mxu0 %v330
        %348 = vmatpush.bf16.msra.mxu0 %v329
        %349 = vmatpush.bf16.msra.mxu0 %v328
        %350 = vmatpush.bf16.msra.mxu0 %v327
        %351 = vmatmul.bf16.gmra.mxu0 %v274
        %v352 = vpop.f32.mrf.mxu0
        %v353 = vadd.f32 %v293, %v352
        %v354 = vpop.f32.mrf.mxu0
        %355 = vdwg.mxu0
        %v356 = vmax.f32 %v353, 0.0
        %v357 = vpack.c.bf16 %v356, %v356
        %v358 = vld [vmem:[%s3] sm:$0xf]
        %v359 = vld [vmem:[%s3 + $0x4] sm:$0xf]
        %v360 = vld [vmem:[%s3 + $0x8] sm:$0xf]
        %v361 = vld [vmem:[%s3 + $0xc] sm:$0xf]
        %v362 = vld [vmem:[%s3 + $0x10] sm:$0xf]
        %v363 = vld [vmem:[%s3 + $0x14] sm:$0xf]
        %v364 = vld [vmem:[%s3 + $0x18] sm:$0xf]
        %v365 = vld [vmem:[%s3 + $0x1c] sm:$0xf]
        %v366 = vld [vmem:[%s3 + $0x20] sm:$0xf]
        %v367 = vld [vmem:[%s3 + $0x24] sm:$0xf]
        %v368 = vld [vmem:[%s3 + $0x28] sm:$0xf]
        %v369 = vld [vmem:[%s3 + $0x2c] sm:$0xf]
        %v370 = vld [vmem:[%s3 + $0x30] sm:$0xf]
        %v371 = vld [vmem:[%s3 + $0x34] sm:$0xf]
        %v372 = vld [vmem:[%s3 + $0x38] sm:$0xf]
        %v373 = vld [vmem:[%s3 + $0x3c] sm:$0xf]
        %v374 = vld [vmem:[%s4] sm:$0x1]
        %v376 = vperm.slane %v374, 0
        %v394 = vunpack.c.l.b16 %v358
        %v395 = vunpack.c.l.b16 %v359
        %v396 = vunpack.c.l.b16 %v360
        %v397 = vunpack.c.l.b16 %v361
        %v398 = vunpack.c.l.b16 %v362
        %v399 = vunpack.c.l.b16 %v363
        %v400 = vunpack.c.l.b16 %v364
        %v401 = vunpack.c.l.b16 %v365
        %v402 = vunpack.c.l.b16 %v366
        %v403 = vunpack.c.l.b16 %v367
        %v404 = vunpack.c.l.b16 %v368
        %v405 = vunpack.c.l.b16 %v369
        %v406 = vunpack.c.l.b16 %v370
        %v407 = vunpack.c.l.b16 %v371
        %v408 = vunpack.c.l.b16 %v372
        %v409 = vunpack.c.l.b16 %v373
        %v410 = vpack.c.b16 %v395, %v394
        %v411 = vpack.c.b16 %v397, %v396
        %v412 = vpack.c.b16 %v399, %v398
        %v413 = vpack.c.b16 %v401, %v400
        %v414 = vpack.c.b16 %v403, %v402
        %v415 = vpack.c.b16 %v405, %v404
        %v416 = vpack.c.b16 %v407, %v406
        %v417 = vpack.c.b16 %v409, %v408
        %426 = vmatpush.bf16.msra.mxu0 %v417
        %427 = vmatpush.bf16.msra.mxu0 %v416
        %428 = vmatpush.bf16.msra.mxu0 %v415
        %429 = vmatpush.bf16.msra.mxu0 %v414
        %430 = vmatpush.bf16.msra.mxu0 %v413
        %431 = vmatpush.bf16.msra.mxu0 %v412
        %432 = vmatpush.bf16.msra.mxu0 %v411
        %433 = vmatpush.bf16.msra.mxu0 %v410
        %434 = vmatmul.bf16.gmra.mxu0 %v357
        %v435 = vpop.f32.mrf.mxu0
        %v436 = vadd.f32 %v376, %v435
        %v437 = vpop.f32.mrf.mxu0
        %438 = vdwg.mxu0
        %v439 = vmax.f32 %v436, 0.0
        %v440 = vpack.c.bf16 %v439, %v439
        %v441 = vld [vmem:[%s5] sm:$0xf]
        %v442 = vld [vmem:[%s5 + $0x4] sm:$0xf]
        %v443 = vld [vmem:[%s5 + $0x8] sm:$0xf]
        %v444 = vld [vmem:[%s5 + $0xc] sm:$0xf]
        %v445 = vld [vmem:[%s5 + $0x10] sm:$0xf]
        %v446 = vld [vmem:[%s5 + $0x14] sm:$0xf]
        %v447 = vld [vmem:[%s5 + $0x18] sm:$0xf]
        %v448 = vld [vmem:[%s5 + $0x1c] sm:$0xf]
        %v449 = vld [vmem:[%s5 + $0x20] sm:$0xf]
        %v450 = vld [vmem:[%s5 + $0x24] sm:$0xf]
        %v451 = vld [vmem:[%s5 + $0x28] sm:$0xf]
        %v452 = vld [vmem:[%s5 + $0x2c] sm:$0xf]
        %v453 = vld [vmem:[%s5 + $0x30] sm:$0xf]
        %v454 = vld [vmem:[%s5 + $0x34] sm:$0xf]
        %v455 = vld [vmem:[%s5 + $0x38] sm:$0xf]
        %v456 = vld [vmem:[%s5 + $0x3c] sm:$0xf]
        %v457 = vld [vmem:[%s6] sm:$0x1]
        %v459 = vperm.slane %v457, 0
        %v477 = vunpack.c.l.b16 %v441
        %v478 = vunpack.c.l.b16 %v442
        %v479 = vunpack.c.l.b16 %v443
        %v480 = vunpack.c.l.b16 %v444
        %v481 = vunpack.c.l.b16 %v445
        %v482 = vunpack.c.l.b16 %v446
        %v483 = vunpack.c.l.b16 %v447
        %v484 = vunpack.c.l.b16 %v448
        %v485 = vunpack.c.l.b16 %v449
        %v486 = vunpack.c.l.b16 %v450
        %v487 = vunpack.c.l.b16 %v451
        %v488 = vunpack.c.l.b16 %v452
        %v489 = vunpack.c.l.b16 %v453
        %v490 = vunpack.c.l.b16 %v454
        %v491 = vunpack.c.l.b16 %v455
        %v492 = vunpack.c.l.b16 %v456
        %v493 = vpack.c.b16 %v478, %v477
        %v494 = vpack.c.b16 %v480, %v479
        %v495 = vpack.c.b16 %v482, %v481
        %v496 = vpack.c.b16 %v484, %v483
        %v497 = vpack.c.b16 %v486, %v485
        %v498 = vpack.c.b16 %v488, %v487
        %v499 = vpack.c.b16 %v490, %v489
        %v500 = vpack.c.b16 %v492, %v491
        %509 = vmatpush.bf16.msra.mxu0 %v500
        %510 = vmatpush.bf16.msra.mxu0 %v499
        %511 = vmatpush.bf16.msra.mxu0 %v498
        %512 = vmatpush.bf16.msra.mxu0 %v497
        %513 = vmatpush.bf16.msra.mxu0 %v496
        %514 = vmatpush.bf16.msra.mxu0 %v495
        %515 = vmatpush.bf16.msra.mxu0 %v494
        %516 = vmatpush.bf16.msra.mxu0 %v493
        %517 = vmatmul.bf16.gmra.mxu0 %v440
        %v518 = vpop.f32.mrf.mxu0
        %v519 = vadd.f32 %v459, %v518
        %v520 = vpop.f32.mrf.mxu0
        %521 = vdwg.mxu0
        %v522 = vmul.f32 %v519, 1.442695
        %v523 = vpow.pop %v522
        %v524 = vadd.f32 %v523, 1.0
        %v525 = vrcp.pop %v524
        %526 = vst [vmem:[%s269] sm:$0xff] %v525
        %s527 = sand.u32 %s181, 1
        %s528 = scalar_lea.sflag [#allocation3], %s527
        %s529 = sand.u32 %s181, 1
        %s530 = smul.addr %s529, 8
        %s531 = scalar_lea.vmem [#allocation2], %s530
        // Predicated region
        $region49: #{posenet_forward.1} parent=47 // pred_check
          %p532 = pneg %p191
        $region50: #{posenet_forward.1} parent=47 // pred_check_branch
          %534 = sbr.rel (%p532) target = $region52
        $region51: #{posenet_forward.1} parent=47 // pred_region
          %536 = vsyncadd %s528, 0
          %s537 = smul.addr %s21, 8
          %s538 = scalar_lea.hbm %s7, %s537
          %s540 = sshll.u32 %s531, 4
          %s541 = int_to_ptr.vmem [resolvable:$true] %s540
          %s542 = sshll.u32 %s538, 4
          %s543 = int_to_ptr.hbm [resolvable:$true] %s542
          %545 = dma.vmem_to_hbm [thread:$0]  %s541, 128, %s543, %s528
        $region52: #{posenet_forward.1} parent=47 // pred_fallthru
          _
      $region48: #{posenet_forward.1} parent=5 // pred_fallthru
        _
      %p546 = scmp.le.s32.totalorder 2, %s16
      // Predicated region
      $region53: #{posenet_forward.1} parent=5 // pred_check
        %p547 = pneg %p546
      $region54: #{posenet_forward.1} parent=5 // pred_check_branch
        %549 = sbr.rel (%p547) target = $region56
      $region55: #{posenet_forward.1} parent=5 // pred_region
        %s550 = ssub.s32 %s16, 2
        // Predicated region
        $region57: #{posenet_forward.1} parent=55 // pred_check
          %p551 = pneg %p197
        $region58: #{posenet_forward.1} parent=55 // pred_check_branch
          %553 = sbr.rel (%p551) target = $region60
        $region59: #{posenet_forward.1} parent=55 // pred_region
          %s554 = sand.u32 %s182, 1
          %s555 = scalar_lea.sflag [#allocation3], %s554
          %s556 = sand.u32 %s182, 1
          %s557 = smul.addr %s556, 8
          %s558 = scalar_lea.vmem [#allocation2], %s557
          %560 = dma.done %s555, 128
        $region60: #{posenet_forward.1} parent=55 // pred_fallthru
          _
      $region56: #{posenet_forward.1} parent=5 // pred_fallthru
        _
    $region6: #{posenet_forward.1} parent=1 // loop_footer
      %s20 = sadd.s32 1, %s16
    $region7: #{posenet_forward.1} parent=1 // loop_footer_branch
      %15 = sbr.rel target = $region3
    $region8: #{posenet_forward.1} parent=1 // loop_exit
      _
    %561 = vsyncpa [#allocation3], 1
    %s562 = scalar_lea.sflag [#allocation3], 1
    %563 = vsyncpa %s562, 1

</llo_original>
